<compile_context>
chip_gen: v7x
topology: tpu7x:2x2x1
jax: 0.10.0
libtpu: 0.0.40
codegen_flags: <defaults>
</compile_context>

<pallas_src>
import functools
import math

import jax
import jax.numpy as jnp
import numpy as np
from jax import lax
from jax.experimental import pallas as pl
from jax.experimental.pallas import tpu as pltpu


# ---------------------------------------------------------------------------
# Fused two-phase kernel (activations are (features, bm): batch on lanes)
# ---------------------------------------------------------------------------

def fused_dqn_kernel(xt_ref, w1t_ref, wslab_ref, bslab_ref, qt_ref,
                     heads_ref, acc_ref, *, out_dim, batch, batch_pad, bm):
    """grid = (2, nt): phase axis outer, batch-tile axis inner.

    Packed slab layout (rows):
      wslab: [0:64] W2^T   [64:128] [Wv1^T; Wa1^T]   [128:] block-diag head-2
      bslab: [0:64] b1     [64:128] b2   [128:192] [bv1; ba1]   [192:] head-2 bias
    heads_ref rows: [0, out_dim) = advantage, row out_dim = value, rest = pad.
    """
    phase = pl.program_id(0)
    t = pl.program_id(1)
    col0 = pl.multiple_of(t * bm, 128)

    @pl.when(phase == 0)
    def _heads_phase():
        xt = xt_ref[...]                                          # (in_dim, bm)

        # fc1 + relu : (64, in_dim) @ (in_dim, bm)
        h1 = jnp.dot(w1t_ref[...], xt, preferred_element_type=jnp.float32)
        h1 = jnp.maximum(h1 + bslab_ref[0:64, :], 0.0)

        # fc2 + relu : (64, 64) @ (64, bm)
        h2 = jnp.dot(wslab_ref[0:64, :], h1, preferred_element_type=jnp.float32)
        h2 = jnp.maximum(h2 + bslab_ref[64:128, :], 0.0)

        # fused head hidden layer: rows 0..31 value-hidden, rows 32..63 adv-hidden
        hh = jnp.dot(wslab_ref[64:128, :], h2, preferred_element_type=jnp.float32)
        hh = jnp.maximum(hh + bslab_ref[128:192, :], 0.0)

        # fused head output layer (block-diagonal packed weight): one MXU pass
        heads = jnp.dot(wslab_ref[128:, :], hh, preferred_element_type=jnp.float32)
        heads = heads + bslab_ref[192:, :]                        # (hp, bm)

        heads_ref[:, pl.ds(col0, bm)] = heads                     # VMEM-resident

        adv = heads[:out_dim, :]
        if batch_pad != batch:   # mask zero-padded batch lanes out of the mean
            lane = lax.broadcasted_iota(jnp.int32, adv.shape, 1)
            adv = jnp.where(t * bm + lane < batch, adv, 0.0)

        @pl.when(t == 0)
        def _init():
            acc_ref[...] = jnp.zeros_like(acc_ref)

        acc_ref[...] += jnp.sum(adv, keepdims=True)               # (1, 1)

    @pl.when(phase == 1)
    def _combine_phase():
        heads = heads_ref[:, pl.ds(col0, bm)]                     # (hp, bm)
        mean = acc_ref[...] * (1.0 / (batch * out_dim))           # (1, 1)
        value = heads[out_dim:out_dim + 1, :]                     # (1, bm)
        # Rows >= out_dim are junk; sliced off in the wrapper.  Full-hp store
        # keeps the vst lane- and sublane-dense.
        qt_ref[...] = value + (heads - mean)


# ---------------------------------------------------------------------------
# Parameter packing + forward wrapper
# ---------------------------------------------------------------------------

def _head_pad(output_dim):
    return max(8, ((output_dim + 1 + 7) // 8) * 8)


def pack_params(params, output_dim):
    """Pack the 12 per-layer tensors into 3 arrays (transposed, fused-head layout)."""
    hp = _head_pad(output_dim)

    w1t = params["w1"].T                                                   # (64, in_dim)
    w2t = params["w2"].T                                                   # (64, 64)
    wh1t = jnp.concatenate([params["wv1"].T, params["wa1"].T], axis=0)     # (64, 64)
    wh2t = jnp.zeros((hp, 64), jnp.float32)
    wh2t = wh2t.at[:output_dim, 32:].set(params["wa2"].T)                  # adv rows
    wh2t = wh2t.at[output_dim, :32].set(params["wv2"][:, 0])               # value row
    wslab = jnp.concatenate([w2t, wh1t, wh2t], axis=0)                     # (128+hp, 64)

    bh1 = jnp.concatenate([params["bv1"].T, params["ba1"].T], axis=0)      # (64, 1)
    bh2 = jnp.zeros((hp, 1), jnp.float32)
    bh2 = bh2.at[:output_dim, 0].set(params["ba2"][0])
    bh2 = bh2.at[output_dim, 0].set(params["bv2"][0, 0])
    bslab = jnp.concatenate([params["b1"].T, params["b2"].T, bh1, bh2], axis=0)  # (192+hp, 1)

    return w1t, wslab, bslab


@functools.partial(jax.jit, static_argnames=("output_dim", "bm"))
def dueling_dqn_forward(x, w1t, wslab, bslab, *, output_dim, bm=128):
    """x: (B, input_dim) f32 -> q: (B, output_dim) f32 (PyTorch semantics).

    bm must be a multiple of 128; for large B use bm=512-1024 (and on v7x keep
    nt = ceil(B/bm) >= 2 if switching to a core-parallel variant).
    """
    B, in_dim = x.shape
    hp = wslab.shape[0] - 128
    assert bm % 128 == 0
    nt = pl.cdiv(B, bm)
    b_pad = nt * bm

    xt = x.T                                                     # (in_dim, B): batch on lanes
    if b_pad != B:
        xt = jnp.pad(xt, ((0, 0), (0, b_pad - B)))

    # Pre-broadcast biases to bm lanes: plain elementwise adds in-kernel.
    bslab_b = jnp.broadcast_to(bslab, (bslab.shape[0], bm))

    kernel = functools.partial(fused_dqn_kernel, out_dim=output_dim,
                               batch=B, batch_pad=b_pad, bm=bm)

    qt = pl.pallas_call(
        kernel,
        out_shape=jax.ShapeDtypeStruct((hp, b_pad), jnp.float32),
        grid=(2, nt),                                            # (phase, batch tile)
        in_specs=[
            # x^T: batch-tiled in phase 0; pinned to the last block in phase 1
            # (same index as phase 0's final step -> no redundant DMA).
            pl.BlockSpec((in_dim, bm),
                         lambda p, t: (0, t * (1 - p) + (nt - 1) * p)),
            pl.BlockSpec((64, in_dim), lambda p, t: (0, 0)),     # W1^T, resident
            pl.BlockSpec((128 + hp, 64), lambda p, t: (0, 0)),   # packed weight slab
            pl.BlockSpec((192 + hp, bm), lambda p, t: (0, 0)),   # lane-broadcast bias slab
        ],
        # Phase 0 keeps the output block index constant (no garbage writeback);
        # phase 1 walks the batch tiles with lane-dense stores.
        out_specs=pl.BlockSpec((hp, bm), lambda p, t: (0, t * p)),
        scratch_shapes=[
            pltpu.VMEM((hp, b_pad), jnp.float32),                # resident heads
            pltpu.VMEM((1, 1), jnp.float32),                     # advantage-sum accumulator
        ],
        compiler_params=pltpu.CompilerParams(
            dimension_semantics=("arbitrary", "arbitrary")),
    )(xt, w1t, wslab, bslab_b)

    return qt[:output_dim, :B].T


# ---------------------------------------------------------------------------
# Init + pure-JAX reference + demo
# ---------------------------------------------------------------------------

def init_params(key, input_dim, output_dim):
    """torch.nn.Linear-style U(-1/sqrt(fan_in), 1/sqrt(fan_in)) init.
    Weights stored (in_features, out_features); biases (1, out_features)."""
    def linear(key, fan_in, fan_out):
        kw, kb = jax.random.split(key)
        bound = 1.0 / math.sqrt(fan_in)
        w = jax.random.uniform(kw, (fan_in, fan_out), jnp.float32, -bound, bound)
        b = jax.random.uniform(kb, (1, fan_out), jnp.float32, -bound, bound)
        return w, b

    keys = jax.random.split(key, 6)
    p = {}
    p["w1"], p["b1"] = linear(keys[0], input_dim, 64)
    p["w2"], p["b2"] = linear(keys[1], 64, 64)
    p["wv1"], p["bv1"] = linear(keys[2], 64, 32)
    p["wv2"], p["bv2"] = linear(keys[3], 32, 1)
    p["wa1"], p["ba1"] = linear(keys[4], 64, 32)
    p["wa2"], p["ba2"] = linear(keys[5], 32, output_dim)
    return p


def reference_forward(x, p):
    """Pure-JAX reference of the same forward (correctness check)."""
    h1 = jnp.maximum(x @ p["w1"] + p["b1"], 0.0)
    h2 = jnp.maximum(h1 @ p["w2"] + p["b2"], 0.0)
    v = jnp.maximum(h2 @ p["wv1"] + p["bv1"], 0.0) @ p["wv2"] + p["bv2"]
    a = jnp.maximum(h2 @ p["wa1"] + p["ba1"], 0.0) @ p["wa2"] + p["ba2"]
    return v + (a - jnp.mean(a))


if __name__ == "__main__":
    # Small shapes; B deliberately NOT a multiple of the batch tile to exercise
    # padding + the last-tile mask + the multi-tile two-phase grid.
    B, INPUT_DIM, OUTPUT_DIM = 200, 16, 4
    BM = 128

    key = jax.random.PRNGKey(0)
    kx, kp = jax.random.split(key)
    x = jax.random.normal(kx, (B, INPUT_DIM), dtype=jnp.float32)
    params = init_params(kp, INPUT_DIM, OUTPUT_DIM)
    w1t, wslab, bslab = pack_params(params, OUTPUT_DIM)

    q = dueling_dqn_forward(x, w1t, wslab, bslab, output_dim=OUTPUT_DIM, bm=BM)
    q = jax.block_until_ready(q)

    q_ref = reference_forward(x, params)
    np.testing.assert_allclose(np.asarray(q), np.asarray(q_ref), rtol=2e-5, atol=2e-5)

    print("KERNEL_OK")
</pallas_src>

<mosaic_0001>
module attributes {stable_mosaic.version = 11 : i64} {
  func.func @fused_dqn_kernel(%arg0: i32, %arg1: i32, %arg2: memref<16x128xf32, #tpu.memory_space<vmem>>, %arg3: memref<64x16xf32, #tpu.memory_space<vmem>>, %arg4: memref<136x64xf32, #tpu.memory_space<vmem>>, %arg5: memref<200x128xf32, #tpu.memory_space<vmem>>, %arg6: memref<8x128xf32, #tpu.memory_space<vmem>>, %arg7: memref<8x256xf32, #tpu.memory_space<vmem>>, %arg8: memref<1x1xf32, #tpu.memory_space<vmem>>) attributes {dimension_semantics = [#tpu.dimension_semantics<arbitrary>, #tpu.dimension_semantics<arbitrary>], iteration_bounds = array<i64: 2, 2>, scalar_prefetch = 0 : i64, scratch_operands = 2 : i64, tpu.core_type = #tpu.core_type<tc>, window_params = [{transform_indices = @transform_0, window_bounds = array<i64: 16, 128>}, {pipeline_mode = #tpu.pipeline_mode<synchronous>, transform_indices = @transform_1, window_bounds = array<i64: 64, 16>}, {pipeline_mode = #tpu.pipeline_mode<synchronous>, transform_indices = @transform_2, window_bounds = array<i64: 136, 64>}, {pipeline_mode = #tpu.pipeline_mode<synchronous>, transform_indices = @transform_3, window_bounds = array<i64: 200, 128>}, {transform_indices = @transform_4, window_bounds = array<i64: 8, 128>}]} {
    %c128_i32 = arith.constant 128 : i32
    %0 = arith.muli %arg1, %c128_i32 : i32
    %1 = tpu.assume_multiple %0, 128 : i32
    %c0_i32 = arith.constant 0 : i32
    %2 = arith.cmpi eq, %arg0, %c0_i32 : i32
    %3 = arith.extui %2 : i1 to i32
    %c0_i32_0 = arith.constant 0 : i32
    %4 = arith.cmpi ne, %3, %c0_i32_0 : i32
    scf.if %4 {
      %c0 = arith.constant 0 : index
      %c0_2 = arith.constant 0 : index
      %8 = vector.load %arg2[%c0, %c0_2] : memref<16x128xf32, #tpu.memory_space<vmem>>, vector<16x128xf32>
      %c0_3 = arith.constant 0 : index
      %c0_4 = arith.constant 0 : index
      %9 = vector.load %arg3[%c0_3, %c0_4] : memref<64x16xf32, #tpu.memory_space<vmem>>, vector<64x16xf32>
      %cst = arith.constant dense<0.000000e+00> : vector<64x128xf32>
      %10 = tpu.matmul %9, %8, %cst {dimension_numbers = #tpu.dot_dimension_numbers<[1], [0], [0], [1], [0, 0, 1, 1], [], []>} : vector<64x16xf32>, vector<16x128xf32>, vector<64x128xf32> -> vector<64x128xf32>
      %c0_5 = arith.constant 0 : index
      %c0_6 = arith.constant 0 : index
      %11 = vector.load %arg5[%c0_5, %c0_6] : memref<200x128xf32, #tpu.memory_space<vmem>>, vector<64x128xf32>
      %12 = arith.addf %10, %11 : vector<64x128xf32>
      %cst_7 = arith.constant 0.000000e+00 : f32
      %13 = vector.broadcast %cst_7 : f32 to vector<64x128xf32>
      %14 = arith.maximumf %12, %13 : vector<64x128xf32>
      %c0_8 = arith.constant 0 : index
      %c0_9 = arith.constant 0 : index
      %15 = vector.load %arg4[%c0_8, %c0_9] : memref<136x64xf32, #tpu.memory_space<vmem>>, vector<64x64xf32>
      %cst_10 = arith.constant dense<0.000000e+00> : vector<64x128xf32>
      %16 = tpu.matmul %15, %14, %cst_10 {dimension_numbers = #tpu.dot_dimension_numbers<[1], [0], [0], [1], [0, 0, 1, 1], [], []>} : vector<64x64xf32>, vector<64x128xf32>, vector<64x128xf32> -> vector<64x128xf32>
      %c64 = arith.constant 64 : index
      %c0_11 = arith.constant 0 : index
      %17 = vector.load %arg5[%c64, %c0_11] : memref<200x128xf32, #tpu.memory_space<vmem>>, vector<64x128xf32>
      %18 = arith.addf %16, %17 : vector<64x128xf32>
      %cst_12 = arith.constant 0.000000e+00 : f32
      %19 = vector.broadcast %cst_12 : f32 to vector<64x128xf32>
      %20 = arith.maximumf %18, %19 : vector<64x128xf32>
      %c64_13 = arith.constant 64 : index
      %c0_14 = arith.constant 0 : index
      %21 = vector.load %arg4[%c64_13, %c0_14] : memref<136x64xf32, #tpu.memory_space<vmem>>, vector<64x64xf32>
      %cst_15 = arith.constant dense<0.000000e+00> : vector<64x128xf32>
      %22 = tpu.matmul %21, %20, %cst_15 {dimension_numbers = #tpu.dot_dimension_numbers<[1], [0], [0], [1], [0, 0, 1, 1], [], []>} : vector<64x64xf32>, vector<64x128xf32>, vector<64x128xf32> -> vector<64x128xf32>
      %c128 = arith.constant 128 : index
      %c0_16 = arith.constant 0 : index
      %23 = vector.load %arg5[%c128, %c0_16] : memref<200x128xf32, #tpu.memory_space<vmem>>, vector<64x128xf32>
      %24 = arith.addf %22, %23 : vector<64x128xf32>
      %cst_17 = arith.constant 0.000000e+00 : f32
      %25 = vector.broadcast %cst_17 : f32 to vector<64x128xf32>
      %26 = arith.maximumf %24, %25 : vector<64x128xf32>
      %c128_18 = arith.constant 128 : index
      %c0_19 = arith.constant 0 : index
      %27 = vector.load %arg4[%c128_18, %c0_19] : memref<136x64xf32, #tpu.memory_space<vmem>>, vector<8x64xf32>
      %cst_20 = arith.constant dense<0.000000e+00> : vector<8x128xf32>
      %28 = tpu.matmul %27, %26, %cst_20 {dimension_numbers = #tpu.dot_dimension_numbers<[1], [0], [0], [1], [0, 0, 1, 1], [], []>} : vector<8x64xf32>, vector<64x128xf32>, vector<8x128xf32> -> vector<8x128xf32>
      %c192 = arith.constant 192 : index
      %c0_21 = arith.constant 0 : index
      %29 = vector.load %arg5[%c192, %c0_21] : memref<200x128xf32, #tpu.memory_space<vmem>>, vector<8x128xf32>
      %30 = arith.addf %28, %29 : vector<8x128xf32>
      %c0_22 = arith.constant 0 : index
      %31 = arith.index_cast %1 : i32 to index
      %32 = vector.load %arg7[%c0_22, %31] : memref<8x256xf32, #tpu.memory_space<vmem>>, vector<8x128xf32>
      tpu.vector_store %arg7[%c0_22, %31], %30 {strides = array<i32>} : memref<8x256xf32, #tpu.memory_space<vmem>>, vector<8x128xf32>,
      %33 = vector.extract_strided_slice %30 {offsets = [0, 0], sizes = [4, 128], strides = [1, 1]} : vector<8x128xf32> to vector<4x128xf32>
      %34 = tpu.iota {dimensions = array<i32: 1>} : vector<4x128xi32>
      %c128_i32_23 = arith.constant 128 : i32
      %35 = arith.muli %arg1, %c128_i32_23 : i32
      %36 = vector.broadcast %35 : i32 to vector<4x128xi32>
      %37 = arith.addi %36, %34 : vector<4x128xi32>
      %c200_i32 = arith.constant 200 : i32
      %38 = vector.broadcast %c200_i32 : i32 to vector<4x128xi32>
      %39 = arith.cmpi slt, %37, %38 : vector<4x128xi32>
      %cst_24 = arith.constant 0.000000e+00 : f32
      %40 = vector.broadcast %cst_24 : f32 to vector<4x128xf32>
      %41 = arith.select %39, %33, %40 : vector<4x128xi1>, vector<4x128xf32>
      %c0_i32_25 = arith.constant 0 : i32
      %42 = arith.cmpi eq, %arg1, %c0_i32_25 : i32
      %43 = arith.extui %42 : i1 to i32
      %c0_i32_26 = arith.constant 0 : i32
      %44 = arith.cmpi ne, %43, %c0_i32_26 : i32
      scf.if %44 {
        %cst_32 = arith.constant 0.000000e+00 : f32
        %53 = vector.broadcast %cst_32 : f32 to vector<1x1xf32>
        %c0_33 = arith.constant 0 : index
        %c0_34 = arith.constant 0 : index
        %54 = vector.load %arg8[%c0_33, %c0_34] : memref<1x1xf32, #tpu.memory_space<vmem>>, vector<1x1xf32>
        tpu.vector_store %arg8[%c0_33, %c0_34], %53 {strides = array<i32>} : memref<1x1xf32, #tpu.memory_space<vmem>>, vector<1x1xf32>,
      } else {
      }
      %c0_27 = arith.constant 0 : index
      %c0_28 = arith.constant 0 : index
      %45 = vector.load %arg8[%c0_27, %c0_28] : memref<1x1xf32, #tpu.memory_space<vmem>>, vector<1x1xf32>
      %46 = vector.shape_cast %41 : vector<4x128xf32> to vector<1x4x128xf32>
      %cst_29 = arith.constant dense<0.000000e+00> : vector<1xf32>
      %47 = vector.multi_reduction <add>, %46, %cst_29 [1, 2] : vector<1x4x128xf32> to vector<1xf32>
      %48 = vector.shape_cast %47 : vector<1xf32> to vector<1x1x1xf32>
      %49 = vector.extract %48[0, 0, 0] : f32 from vector<1x1x1xf32>
      %50 = vector.broadcast %49 : f32 to vector<1x1xf32>
      %51 = arith.addf %45, %50 : vector<1x1xf32>
      %c0_30 = arith.constant 0 : index
      %c0_31 = arith.constant 0 : index
      %52 = vector.load %arg8[%c0_30, %c0_31] : memref<1x1xf32, #tpu.memory_space<vmem>>, vector<1x1xf32>
      tpu.vector_store %arg8[%c0_30, %c0_31], %51 {strides = array<i32>} : memref<1x1xf32, #tpu.memory_space<vmem>>, vector<1x1xf32>,
    } else {
    }
    %c1_i32 = arith.constant 1 : i32
    %5 = arith.cmpi eq, %arg0, %c1_i32 : i32
    %6 = arith.extui %5 : i1 to i32
    %c0_i32_1 = arith.constant 0 : i32
    %7 = arith.cmpi ne, %6, %c0_i32_1 : i32
    scf.if %7 {
      %c0 = arith.constant 0 : index
      %8 = arith.index_cast %1 : i32 to index
      %9 = vector.load %arg7[%c0, %8] : memref<8x256xf32, #tpu.memory_space<vmem>>, vector<8x128xf32>
      %c0_2 = arith.constant 0 : index
      %c0_3 = arith.constant 0 : index
      %10 = vector.load %arg8[%c0_2, %c0_3] : memref<1x1xf32, #tpu.memory_space<vmem>>, vector<1x1xf32>
      %cst = arith.constant 1.250000e-03 : f32
      %11 = vector.broadcast %cst : f32 to vector<1x1xf32>
      %12 = arith.mulf %10, %11 : vector<1x1xf32>
      %13 = vector.extract_strided_slice %9 {offsets = [4, 0], sizes = [1, 128], strides = [1, 1]} : vector<8x128xf32> to vector<1x128xf32>
      %14 = vector.broadcast %12 : vector<1x1xf32> to vector<8x128xf32>
      %15 = arith.subf %9, %14 : vector<8x128xf32>
      %16 = vector.broadcast %13 : vector<1x128xf32> to vector<8x128xf32>
      %17 = arith.addf %16, %15 : vector<8x128xf32>
      %c0_4 = arith.constant 0 : index
      %c0_5 = arith.constant 0 : index
      %18 = vector.load %arg6[%c0_4, %c0_5] : memref<8x128xf32, #tpu.memory_space<vmem>>, vector<8x128xf32>
      tpu.vector_store %arg6[%c0_4, %c0_5], %17 {strides = array<i32>} : memref<8x128xf32, #tpu.memory_space<vmem>>, vector<8x128xf32>,
    } else {
    }
    return
  }
  func.func @transform_0(%arg0: i32, %arg1: i32) -> (i32, i32) {
    %c1_i32 = arith.constant 1 : i32
    %0 = arith.subi %c1_i32, %arg0 : i32
    %1 = arith.muli %arg1, %0 : i32
    %c1_i32_0 = arith.constant 1 : i32
    %2 = arith.muli %c1_i32_0, %arg0 : i32
    %3 = arith.addi %1, %2 : i32
    %c0_i32 = arith.constant 0 : i32
    %c0_i32_1 = arith.constant 0 : i32
    return %c0_i32, %3 : i32, i32
  }
  func.func @transform_1(%arg0: i32, %arg1: i32) -> (i32, i32) {
    %c0_i32 = arith.constant 0 : i32
    %c0_i32_0 = arith.constant 0 : i32
    %c0_i32_1 = arith.constant 0 : i32
    return %c0_i32, %c0_i32_0 : i32, i32
  }
  func.func @transform_2(%arg0: i32, %arg1: i32) -> (i32, i32) {
    %c0_i32 = arith.constant 0 : i32
    %c0_i32_0 = arith.constant 0 : i32
    %c0_i32_1 = arith.constant 0 : i32
    return %c0_i32, %c0_i32_0 : i32, i32
  }
  func.func @transform_3(%arg0: i32, %arg1: i32) -> (i32, i32) {
    %c0_i32 = arith.constant 0 : i32
    %c0_i32_0 = arith.constant 0 : i32
    %c0_i32_1 = arith.constant 0 : i32
    return %c0_i32, %c0_i32_0 : i32, i32
  }
  func.func @transform_4(%arg0: i32, %arg1: i32) -> (i32, i32) {
    %0 = arith.muli %arg1, %arg0 : i32
    %c0_i32 = arith.constant 0 : i32
    %c0_i32_0 = arith.constant 0 : i32
    return %c0_i32, %0 : i32, i32
  }
}

</mosaic_0001>

<llo_original>
// kernel: dueling_dqn_forward.1
$region0: #{dueling_dqn_forward.1}
  #allocation0 [shape = 'u32[]', space=smem, size = 0x4, offset = 0x4, fixed_abs, tag = 'smem constant byte address 0x4 - core index']
  #allocation1 [shape = 'u32[144,128]{1,0:T(1,128)}', space=vmem, size = 0x12000, scoped, tag = 'internal scratch']
  #allocation2 [shape = 'f32[8,256]{1,0:T(8,128)}', space=vmem, size = 0x2000, scoped, tag = 'scratch operand']
  #allocation3 [shape = 'f32[1,1]{1,0:T(1,128)}', space=vmem, size = 0x200, scoped, tag = 'scratch operand']
  %s0 = inlined_call_operand.vmem [shape: f32[16,256], index: 0, kind: input, shape index: {}]
  %s1 = inlined_call_operand.vmem [shape: f32[64,16], index: 1, kind: input, shape index: {}]
  %s2 = inlined_call_operand.vmem [shape: f32[136,64], index: 2, kind: input, shape index: {}]
  %s3 = inlined_call_operand.vmem [shape: f32[200,128], index: 3, kind: input, shape index: {}]
  %s4 = inlined_call_operand.vmem [shape: f32[8,256], index: 4, kind: output, shape index: {}]
  %s5 = sld [smem:[#allocation0]]
  $region99: #{dueling_dqn_forward.1} parent=0
    _
  %s7 = ssub.s32 1, %s5
  %s8 = scalar_select 0, %s7, %s5
  $region1: #{dueling_dqn_forward.1} parent=0
    #allocation4 [shape = 'u8[16384]{0}', space=vmem, size = 0x4000, scoped, tag = 'input window, operand 0']
    loop: start=0, step=1, limit=6
    $region2: #{dueling_dqn_forward.1} parent=1 // loop_pre_header
      _
    $region3: #{dueling_dqn_forward.1} parent=1 // loop_header
      %s10 = sphi 0, %s14
      %p11 = scmp.ge.s32.totalorder %s10, 6
      %s17 = sphi 0, %s29
      %s18 = sphi 0, %s25
      %s19 = sphi 0, %s17
      %s20 = sphi 0, %s18
      %s21 = sphi 0, %s19
      %s22 = sphi 0, %s20
      %s38 = sphi 0, %s40
      %s41 = sphi 0, %s38
      %s42 = sphi 0, %s41
      %s58 = sphi 0, %s42
      %s62 = sphi 0, %s62
      %s64 = sphi 0, %s62
      %s65 = sphi 0, %s64
      %s79 = sphi 0, %s65
      %s83 = sphi 0, %s83
      %s85 = sphi 0, %s83
      %s86 = sphi 0, %s85
      %s100 = sphi 0, %s86
      %s104 = sphi 0, %s104
      %s106 = sphi 0, %s104
      %s107 = sphi 0, %s106
      %s121 = sphi 0, %s107
      %s129 = sphi 0, %s131
      %s132 = sphi 0, %s129
      %s133 = sphi 0, %s132
      %s149 = sphi 0, %s133
    $region4: #{dueling_dqn_forward.1} parent=1 // loop_header_branch
      %13 = sbr.rel (%p11) target = $region8
    $region5: #{dueling_dqn_forward.1} parent=1 // loop_body
      %s15 = ssub.s32 %s10, 1
      %s16 = ssub.s32 %s10, 2
      %s23 = sadd.s32 1, %s18
      %p24 = scmp.ge.s32.totalorder %s23, 2
      %s25 = scalar_select %p24, 0, %s23
      %s26 = sadd.s32 1, %s17
      %s27 = scalar_select %p24, %s26, %s17
      %p28 = scmp.ge.s32.totalorder %s27, 2
      %s29 = scalar_select %p28, 0, %s27
      %s30 = ssub.s32 1, %s17
      %s31 = smul.u32 %s18, %s30
      %s32 = sadd.s32 %s31, %s17
      %s33 = ssub.s32 1, %s29
      %s34 = smul.u32 %s25, %s33
      %s35 = sadd.s32 %s34, %s29
      %s36 = ssub.s32 %s32, %s35
      %p37 = scmp.eq.s32.totalorder %s36, 0
      %s39 = sadd.s32 %s38, 1
      %s40 = scalar_select %p37, %s38, %s39
      %p43 = pneg %p37
      %p44 = scmp.eq.s32.totalorder %s10, 3
      %p45 = por %p43, %p44
      %p46 = scmp.ne.s32.totalorder %s38, %s41
      %p47 = scmp.eq.s32.totalorder %s10, 0
      %p48 = por %p46, %p47
      %p49 = scmp.ne.s32.totalorder %s38, %s41
      %p50 = scmp.eq.s32.totalorder %s15, 3
      %p51 = por %p49, %p50
      %p52 = scmp.ne.s32.totalorder %s41, %s42
      %p53 = scmp.eq.s32.totalorder %s15, 0
      %p54 = por %p52, %p53
      %p55 = scmp.ne.s32.totalorder %s41, %s42
      %p56 = scmp.eq.s32.totalorder %s16, 3
      %p57 = por %p55, %p56
      %p59 = scmp.ne.s32.totalorder %s42, %s58
      %p60 = scmp.eq.s32.totalorder %s16, 0
      %p61 = por %p59, %p60
      %s63 = sadd.s32 %s62, 1
      %p66 = scmp.eq.s32.totalorder %s10, 3
      %p67 = scmp.ne.s32.totalorder %s62, %s64
      %p68 = scmp.eq.s32.totalorder %s10, 0
      %p69 = por %p67, %p68
      %p70 = scmp.ne.s32.totalorder %s62, %s64
      %p71 = scmp.eq.s32.totalorder %s15, 3
      %p72 = por %p70, %p71
      %p73 = scmp.ne.s32.totalorder %s64, %s65
      %p74 = scmp.eq.s32.totalorder %s15, 0
      %p75 = por %p73, %p74
      %p76 = scmp.ne.s32.totalorder %s64, %s65
      %p77 = scmp.eq.s32.totalorder %s16, 3
      %p78 = por %p76, %p77
      %p80 = scmp.ne.s32.totalorder %s65, %s79
      %p81 = scmp.eq.s32.totalorder %s16, 0
      %p82 = por %p80, %p81
      %s84 = sadd.s32 %s83, 1
      %p87 = scmp.eq.s32.totalorder %s10, 3
      %p88 = scmp.ne.s32.totalorder %s83, %s85
      %p89 = scmp.eq.s32.totalorder %s10, 0
      %p90 = por %p88, %p89
      %p91 = scmp.ne.s32.totalorder %s83, %s85
      %p92 = scmp.eq.s32.totalorder %s15, 3
      %p93 = por %p91, %p92
      %p94 = scmp.ne.s32.totalorder %s85, %s86
      %p95 = scmp.eq.s32.totalorder %s15, 0
      %p96 = por %p94, %p95
      %p97 = scmp.ne.s32.totalorder %s85, %s86
      %p98 = scmp.eq.s32.totalorder %s16, 3
      %p99 = por %p97, %p98
      %p101 = scmp.ne.s32.totalorder %s86, %s100
      %p102 = scmp.eq.s32.totalorder %s16, 0
      %p103 = por %p101, %p102
      %s105 = sadd.s32 %s104, 1
      %p108 = scmp.eq.s32.totalorder %s10, 3
      %p109 = scmp.ne.s32.totalorder %s104, %s106
      %p110 = scmp.eq.s32.totalorder %s10, 0
      %p111 = por %p109, %p110
      %p112 = scmp.ne.s32.totalorder %s104, %s106
      %p113 = scmp.eq.s32.totalorder %s15, 3
      %p114 = por %p112, %p113
      %p115 = scmp.ne.s32.totalorder %s106, %s107
      %p116 = scmp.eq.s32.totalorder %s15, 0
      %p117 = por %p115, %p116
      %p118 = scmp.ne.s32.totalorder %s106, %s107
      %p119 = scmp.eq.s32.totalorder %s16, 3
      %p120 = por %p118, %p119
      %p122 = scmp.ne.s32.totalorder %s107, %s121
      %p123 = scmp.eq.s32.totalorder %s16, 0
      %p124 = por %p122, %p123
      %s125 = smul.u32 %s18, %s17
      %s126 = smul.u32 %s25, %s29
      %s127 = ssub.s32 %s125, %s126
      %p128 = scmp.eq.s32.totalorder %s127, 0
      %s130 = sadd.s32 %s129, 1
      %s131 = scalar_select %p128, %s129, %s130
      %p134 = pneg %p128
      %p135 = scmp.eq.s32.totalorder %s10, 3
      %p136 = por %p134, %p135
      %p137 = scmp.ne.s32.totalorder %s129, %s132
      %p138 = scmp.eq.s32.totalorder %s10, 0
      %p139 = por %p137, %p138
      %p140 = scmp.ne.s32.totalorder %s129, %s132
      %p141 = scmp.eq.s32.totalorder %s15, 3
      %p142 = por %p140, %p141
      %p143 = scmp.ne.s32.totalorder %s132, %s133
      %p144 = scmp.eq.s32.totalorder %s15, 0
      %p145 = por %p143, %p144
      %p146 = scmp.ne.s32.totalorder %s132, %s133
      %p147 = scmp.eq.s32.totalorder %s16, 3
      %p148 = por %p146, %p147
      %p150 = scmp.ne.s32.totalorder %s133, %s149
      %p151 = scmp.eq.s32.totalorder %s16, 0
      %p152 = por %p150, %p151
      %p153 = scmp.le.s32.totalorder 1, %s10
      %p154 = scmp.lt.s32.totalorder %s10, 5
      %p155 = pnand %p153, %p154
      %p156 = pneg %p155
      // Predicated region
      $region9: #{dueling_dqn_forward.1} parent=5 // pred_check
        _
      $region10: #{dueling_dqn_forward.1} parent=5 // pred_check_branch
        %158 = sbr.rel (%p155) target = $region12
      $region11: #{dueling_dqn_forward.1} parent=5 // pred_region
        %s159 = ssub.s32 %s10, 1
        // Predicated region
        $region13: #{dueling_dqn_forward.1} parent=11 // pred_check
          %p160 = pneg %p75
        $region14: #{dueling_dqn_forward.1} parent=11 // pred_check_branch
          %162 = sbr.rel (%p160) target = $region16
        $region15: #{dueling_dqn_forward.1} parent=11 // pred_region
          _
        $region16: #{dueling_dqn_forward.1} parent=11 // pred_fallthru
          _
        // Predicated region
        $region17: #{dueling_dqn_forward.1} parent=11 // pred_check
          %p163 = pneg %p96
        $region18: #{dueling_dqn_forward.1} parent=11 // pred_check_branch
          %165 = sbr.rel (%p163) target = $region20
        $region19: #{dueling_dqn_forward.1} parent=11 // pred_region
          _
        $region20: #{dueling_dqn_forward.1} parent=11 // pred_fallthru
          _
        // Predicated region
        $region21: #{dueling_dqn_forward.1} parent=11 // pred_check
          %p166 = pneg %p117
        $region22: #{dueling_dqn_forward.1} parent=11 // pred_check_branch
          %168 = sbr.rel (%p166) target = $region24
        $region23: #{dueling_dqn_forward.1} parent=11 // pred_region
          _
        $region24: #{dueling_dqn_forward.1} parent=11 // pred_fallthru
          _
      $region12: #{dueling_dqn_forward.1} parent=5 // pred_fallthru
        _
      %p169 = scmp.lt.s32.totalorder %s10, 4
      // Predicated region
      $region25: #{dueling_dqn_forward.1} parent=5 // pred_check
        %p170 = pneg %p169
      $region26: #{dueling_dqn_forward.1} parent=5 // pred_check_branch
        %172 = sbr.rel (%p170) target = $region28
      $region27: #{dueling_dqn_forward.1} parent=5 // pred_region
        // Predicated region
        $region29: #{dueling_dqn_forward.1} parent=27 // pred_check
          %p173 = pneg %p48
        $region30: #{dueling_dqn_forward.1} parent=27 // pred_check_branch
          %175 = sbr.rel (%p173) target = $region32
        $region31: #{dueling_dqn_forward.1} parent=27 // pred_region
          %s176 = sand.u32 %s38, 1
          %s177 = sand.u32 %s38, 1
          %s178 = smul.addr %s177, 16
          %s179 = scalar_lea.vmem [#allocation4], %s178
          %s180 = ssub.s32 1, %s17
          %s181 = smul.u32 %s18, %s180
          %s182 = sadd.s32 %s181, %s17
          %s183 = smul.addr %s182, 8
          %s184 = scalar_lea.vmem %s0, %s183
          // Predicated region
          $region33: #{dueling_dqn_forward.1} parent=31 // pred_check
            _
          $region34: #{dueling_dqn_forward.1} parent=31 // pred_check_branch
            %186 = sbr.rel (0) target = $region36
          $region35: #{dueling_dqn_forward.1} parent=31 // pred_region
            // Predicated region
            $region37: #{dueling_dqn_forward.1} parent=35 // pred_check
              _
            $region38: #{dueling_dqn_forward.1} parent=35 // pred_check_branch
              %188 = sbr.rel (0) target = $region40
            $region39: #{dueling_dqn_forward.1} parent=35 // pred_region
              // Predicated region
              $region52: #{dueling_dqn_forward.1} parent=39 // pred_check
                _
              $region53: #{dueling_dqn_forward.1} parent=39 // pred_check_branch
                %205 = sbr.rel (0) target = $region55
              $region54: #{dueling_dqn_forward.1} parent=39 // pred_region
                loop: start=0, step=1, limit=1
                $region56: #{dueling_dqn_forward.1} parent=54 // loop_pre_header
                  _
                $region57: #{dueling_dqn_forward.1} parent=54 // loop_header
                  %s207 = sphi 0, %s211
                  %p208 = scmp.ge.s32.totalorder %s207, 1
                  %s212 = sphi %s184, %s184
                  %s213 = sphi %s179, %s179
                $region58: #{dueling_dqn_forward.1} parent=54 // loop_header_branch
                  %210 = sbr.rel (%p208) target = $region62
                $region59: #{dueling_dqn_forward.1} parent=54 // loop_body
                  %v214 = vld [vmem:[%s212] sm:$0xff]
                  %215 = vst [vmem:[%s213] sm:$0xff] %v214
                  %v216 = vld [vmem:[%s212 + $0x10] sm:$0xff]
                  %217 = vst [vmem:[%s213 + $0x8] sm:$0xff] %v216
                $region60: #{dueling_dqn_forward.1} parent=54 // loop_footer
                  %s211 = sadd.s32 1, %s207
                $region61: #{dueling_dqn_forward.1} parent=54 // loop_footer_branch
                  %206 = sbr.rel target = $region57
                $region62: #{dueling_dqn_forward.1} parent=54 // loop_exit
                  _
              $region55: #{dueling_dqn_forward.1} parent=39 // pred_fallthru
                _
              // Predicated region
              $region63: #{dueling_dqn_forward.1} parent=39 // pred_check
                _
              $region64: #{dueling_dqn_forward.1} parent=39 // pred_check_branch
                %219 = sbr.rel target = $region66
              $region65: #{dueling_dqn_forward.1} parent=39 // pred_region
                _
              $region66: #{dueling_dqn_forward.1} parent=39 // pred_fallthru
                _
            $region40: #{dueling_dqn_forward.1} parent=35 // pred_fallthru
              _
            // Predicated region
            $region41: #{dueling_dqn_forward.1} parent=35 // pred_check
              _
            $region42: #{dueling_dqn_forward.1} parent=35 // pred_check_branch
              %190 = sbr.rel target = $region44
            $region43: #{dueling_dqn_forward.1} parent=35 // pred_region
              loop: start=0, step=1, limit=1
              $region45: #{dueling_dqn_forward.1} parent=43 // loop_pre_header
                _
              $region46: #{dueling_dqn_forward.1} parent=43 // loop_header
                %s193 = sphi 0, %s197
                %p194 = scmp.ge.s32.totalorder %s193, 1
                %s198 = sphi %s184, %s184
                %s199 = sphi %s179, %s179
              $region47: #{dueling_dqn_forward.1} parent=43 // loop_header_branch
                %196 = sbr.rel (%p194) target = $region51
              $region48: #{dueling_dqn_forward.1} parent=43 // loop_body
                %v200 = vld [vmem:[%s198] sm:$0xff]
                %201 = vst [vmem:[%s199] sm:$0xff] %v200
                %v202 = vld [vmem:[%s198 + $0x10] sm:$0xff]
                %203 = vst [vmem:[%s199 + $0x8] sm:$0xff] %v202
              $region49: #{dueling_dqn_forward.1} parent=43 // loop_footer
                %s197 = sadd.s32 1, %s193
              $region50: #{dueling_dqn_forward.1} parent=43 // loop_footer_branch
                %192 = sbr.rel target = $region46
              $region51: #{dueling_dqn_forward.1} parent=43 // loop_exit
                _
            $region44: #{dueling_dqn_forward.1} parent=35 // pred_fallthru
              _
          $region36: #{dueling_dqn_forward.1} parent=31 // pred_fallthru
            _
          %220 = vnop
        $region32: #{dueling_dqn_forward.1} parent=27 // pred_fallthru
          _
      $region28: #{dueling_dqn_forward.1} parent=5 // pred_fallthru
        _
      %p221 = scmp.le.s32.totalorder 1, %s10
      %p222 = scmp.lt.s32.totalorder %s10, 5
      %p223 = pnand %p221, %p222
      %p224 = pneg %p223
      // Predicated region
      $region67: #{dueling_dqn_forward.1} parent=5 // pred_check
        _
      $region68: #{dueling_dqn_forward.1} parent=5 // pred_check_branch
        %226 = sbr.rel (%p223) target = $region70
      $region69: #{dueling_dqn_forward.1} parent=5 // pred_region
        %s227 = ssub.s32 %s10, 1
        %s228 = sand.u32 %s41, 1
        %s229 = sand.u32 %s41, 1
        %s230 = smul.addr %s229, 16
        %s231 = scalar_lea.vmem [#allocation4], %s230
        // Predicated region
        $region71: #{dueling_dqn_forward.1} parent=69 // pred_check
          %p232 = pneg %p54
        $region72: #{dueling_dqn_forward.1} parent=69 // pred_check_branch
          %234 = sbr.rel (%p232) target = $region74
        $region73: #{dueling_dqn_forward.1} parent=69 // pred_region
          _
        $region74: #{dueling_dqn_forward.1} parent=69 // pred_fallthru
          _
        %s235 = sand.u32 %s41, 1
        %s236 = sand.u32 %s41, 1
        %s237 = smul.addr %s236, 16
        %s238 = scalar_lea.vmem [#allocation4], %s237
        %p239 = pneg %p54
        %p240 = pneg %p51
        %p241 = pneg %p75
        %p242 = pneg %p72
        %p243 = pneg %p96
        %p244 = pneg %p93
        %p245 = pneg %p117
        %p246 = pneg %p114
        %p247 = pneg %p145
        %p248 = pneg %p142
        %s249 = smul.u32 %s20, %s19
        %p250 = scmp.lt.s32.totalorder %s249, 1
        %s251 = scalar_select %p250, %s249, 1
        %s252 = smul.addr %s251, 8
        %s253 = scalar_lea.vmem %s4, %s252
        %s254 = ssub.s32 1, %s19
        %s255 = smul.u32 %s20, %s254
        %s256 = sadd.s32 %s255, %s19
        %s257 = smul.u32 %s20, %s19
        %p258 = scmp.lt.s32.totalorder %s257, 1
        %s259 = scalar_select %p258, %s257, 1
        %s260 = smul.addr %s259, 8
        %s261 = scalar_lea.vmem %s4, %s260
        %s262 = smul.u32 %s20, %s19
        %s263 = smul.u32 %s20, 128
        %p264 = scmp.eq.s32.totalorder %s19, 0
        // Predicated region
        $region75: #{dueling_dqn_forward.1} parent=69 // pred_check
          %p265 = pneg %p264
        $region76: #{dueling_dqn_forward.1} parent=69 // pred_check_branch
          %267 = sbr.rel (%p265) target = $region78
        $region77: #{dueling_dqn_forward.1} parent=69 // pred_region
          %v268 = vld [vmem:[%s231] sm:$0xff]
          %v269 = vld [vmem:[%s231 + $0x8] sm:$0xff]
          %v270 = vld [vmem:[%s1] sm:$0xff]
          %v271 = vld [vmem:[%s1 + $0x8] sm:$0xff]
          %v272 = vld [vmem:[%s1 + $0x10] sm:$0xff]
          %v273 = vld [vmem:[%s1 + $0x18] sm:$0xff]
          %v274 = vld [vmem:[%s1 + $0x20] sm:$0xff]
          %v275 = vld [vmem:[%s1 + $0x28] sm:$0xff]
          %v276 = vld [vmem:[%s1 + $0x30] sm:$0xff]
          %v277 = vld [vmem:[%s1 + $0x38] sm:$0xff]
          %v278 = vld [vmem:[%s3] sm:$0xff]
          %v279 = vld [vmem:[%s3 + $0x8] sm:$0xff]
          %v280 = vld [vmem:[%s3 + $0x10] sm:$0xff]
          %v281 = vld [vmem:[%s3 + $0x18] sm:$0xff]
          %v282 = vld [vmem:[%s3 + $0x20] sm:$0xff]
          %v283 = vld [vmem:[%s3 + $0x28] sm:$0xff]
          %v284 = vld [vmem:[%s3 + $0x30] sm:$0xff]
          %v285 = vld [vmem:[%s3 + $0x38] sm:$0xff]
          %vm286 = vcmask 130048
          %v288 = vsel %vm286, %v270, 0
          %v291 = vsel %vm286, %v271, 0
          %v294 = vsel %vm286, %v272, 0
          %v297 = vsel %vm286, %v273, 0
          %v300 = vsel %vm286, %v274, 0
          %v303 = vsel %vm286, %v275, 0
          %v306 = vsel %vm286, %v276, 0
          %v309 = vsel %vm286, %v277, 0
          %311 = vmatprep.subr.mxu0 0.0
          %312 = vmatpush1.msra.mxu0 %v268
          %313 = vmatprep.subr.mxu0 0.0
          %314 = vmatpush1.msra.mxu0 %v269
          %315 = vmatprep.subr.mxu0 0.0
          %316 = vmatpush1.msra.mxu0 0.0
          %317 = vmatprep.subr.mxu0 0.0
          %318 = vmatpush1.msra.mxu0 0.0
          %319 = vmatprep.subr.mxu0 0.0
          %320 = vmatpush1.msra.mxu0 0.0
          %321 = vmatprep.subr.mxu0 0.0
          %322 = vmatpush1.msra.mxu0 0.0
          %323 = vmatprep.subr.mxu0 0.0
          %324 = vmatpush1.msra.mxu0 0.0
          %325 = vmatprep.subr.mxu0 0.0
          %326 = vmatpush1.msra.mxu0 0.0
          %327 = vmatprep.subr.mxu0 0.0
          %328 = vmatpush1.msra.mxu0 0.0
          %329 = vmatprep.subr.mxu0 0.0
          %330 = vmatpush1.msra.mxu0 0.0
          %331 = vmatprep.subr.mxu0 0.0
          %332 = vmatpush1.msra.mxu0 0.0
          %333 = vmatprep.subr.mxu0 0.0
          %334 = vmatpush1.msra.mxu0 0.0
          %335 = vmatprep.subr.mxu0 0.0
          %336 = vmatpush1.msra.mxu0 0.0
          %337 = vmatprep.subr.mxu0 0.0
          %338 = vmatpush1.msra.mxu0 0.0
          %339 = vmatprep.subr.mxu0 0.0
          %340 = vmatpush1.msra.mxu0 0.0
          %341 = vmatprep.subr.mxu0 0.0
          %342 = vmatpush1.msra.mxu0 0.0
          %343 = vmatprep.subr.mxu0 0.0
          %344 = vmatpush1.msra.mxu0 0.0
          %345 = vmatprep.subr.mxu0 0.0
          %346 = vmatpush1.msra.mxu0 0.0
          %347 = vmatprep.subr.mxu0 0.0
          %348 = vmatpush1.msra.mxu0 0.0
          %349 = vmatprep.subr.mxu0 0.0
          %350 = vmatpush1.msra.mxu0 0.0
          %351 = vmatprep.subr.mxu0 0.0
          %352 = vmatpush1.msra.mxu0 0.0
          %353 = vmatprep.subr.mxu0 0.0
          %354 = vmatpush1.msra.mxu0 0.0
          %355 = vmatprep.subr.mxu0 0.0
          %356 = vmatpush1.msra.mxu0 0.0
          %357 = vmatprep.subr.mxu0 0.0
          %358 = vmatpush1.msra.mxu0 0.0
          %359 = vmatprep.subr.mxu0 0.0
          %360 = vmatpush1.msra.mxu0 0.0
          %361 = vmatprep.subr.mxu0 0.0
          %362 = vmatpush1.msra.mxu0 0.0
          %363 = vmatprep.subr.mxu0 0.0
          %364 = vmatpush1.msra.mxu0 0.0
          %365 = vmatprep.subr.mxu0 0.0
          %366 = vmatpush1.msra.mxu0 0.0
          %367 = vmatprep.subr.mxu0 0.0
          %368 = vmatpush1.msra.mxu0 0.0
          %369 = vmatprep.subr.mxu0 0.0
          %370 = vmatpush1.msra.mxu0 0.0
          %371 = vmatprep.subr.mxu0 0.0
          %372 = vmatpush1.msra.mxu0 0.0
          %373 = vmatprep.subr.mxu0 0.0
          %374 = vmatpush1.msra.mxu0 0.0
          %375 = vmatprep.mubr.f32.mxu0 0.0
          %376 = vmatmul.mubr.f32.gmra.mrb[0].mxu0 %v288
          %v377 = vpop.f32.mrb[0].mxu0
          %v378 = vadd.f32 %v278, %v377
          %v379 = vpop.f32.mrb[0].mxu0
          %380 = vmatprep.mubr.f32.mxu0 0.0
          %381 = vmatmul.mubr.f32.gmra.mrb[0].mxu0 %v291
          %v382 = vpop.f32.mrb[0].mxu0
          %v383 = vadd.f32 %v279, %v382
          %v384 = vpop.f32.mrb[0].mxu0
          %385 = vmatprep.mubr.f32.mxu0 0.0
          %386 = vmatmul.mubr.f32.gmra.mrb[0].mxu0 %v294
          %v387 = vpop.f32.mrb[0].mxu0
          %v388 = vadd.f32 %v280, %v387
          %v389 = vpop.f32.mrb[0].mxu0
          %390 = vmatprep.mubr.f32.mxu0 0.0
          %391 = vmatmul.mubr.f32.gmra.mrb[0].mxu0 %v297
          %v392 = vpop.f32.mrb[0].mxu0
          %v393 = vadd.f32 %v281, %v392
          %v394 = vpop.f32.mrb[0].mxu0
          %395 = vmatprep.mubr.f32.mxu0 0.0
          %396 = vmatmul.mubr.f32.gmra.mrb[0].mxu0 %v300
          %v397 = vpop.f32.mrb[0].mxu0
          %v398 = vadd.f32 %v282, %v397
          %v399 = vpop.f32.mrb[0].mxu0
          %400 = vmatprep.mubr.f32.mxu0 0.0
          %401 = vmatmul.mubr.f32.gmra.mrb[0].mxu0 %v303
          %v402 = vpop.f32.mrb[0].mxu0
          %v403 = vadd.f32 %v283, %v402
          %v404 = vpop.f32.mrb[0].mxu0
          %405 = vmatprep.mubr.f32.mxu0 0.0
          %406 = vmatmul.mubr.f32.gmra.mrb[0].mxu0 %v306
          %v407 = vpop.f32.mrb[0].mxu0
          %v408 = vadd.f32 %v284, %v407
          %v409 = vpop.f32.mrb[0].mxu0
          %410 = vmatprep.mubr.f32.mxu0 0.0
          %411 = vmatmul.mubr.f32.gmra.mrb[0].mxu0 %v309
          %v412 = vpop.f32.mrb[0].mxu0
          %v413 = vadd.f32 %v285, %v412
          %v414 = vpop.f32.mrb[0].mxu0
          %415 = vdwg.mxu0
          %v416 = vmax.f32 %v378, 0.0
          %v417 = vmax.f32 %v383, 0.0
          %v418 = vmax.f32 %v388, 0.0
          %v419 = vmax.f32 %v393, 0.0
          %v420 = vmax.f32 %v398, 0.0
          %v421 = vmax.f32 %v403, 0.0
          %v422 = vmax.f32 %v408, 0.0
          %v423 = vmax.f32 %v413, 0.0
          %v424 = vld [vmem:[%s2] sm:$0xff]
          %v425 = vld [vmem:[%s2 + $0x8] sm:$0xff]
          %v426 = vld [vmem:[%s2 + $0x10] sm:$0xff]
          %v427 = vld [vmem:[%s2 + $0x18] sm:$0xff]
          %v428 = vld [vmem:[%s2 + $0x20] sm:$0xff]
          %v429 = vld [vmem:[%s2 + $0x28] sm:$0xff]
          %v430 = vld [vmem:[%s2 + $0x30] sm:$0xff]
          %v431 = vld [vmem:[%s2 + $0x38] sm:$0xff]
          %v432 = vld [vmem:[%s3 + $0x40] sm:$0xff]
          %v433 = vld [vmem:[%s3 + $0x48] sm:$0xff]
          %v434 = vld [vmem:[%s3 + $0x50] sm:$0xff]
          %v435 = vld [vmem:[%s3 + $0x58] sm:$0xff]
          %v436 = vld [vmem:[%s3 + $0x60] sm:$0xff]
          %v437 = vld [vmem:[%s3 + $0x68] sm:$0xff]
          %v438 = vld [vmem:[%s3 + $0x70] sm:$0xff]
          %v439 = vld [vmem:[%s3 + $0x78] sm:$0xff]
          %vm440 = vcmask 523264
          %v442 = vsel %vm440, %v424, 0
          %v445 = vsel %vm440, %v425, 0
          %v448 = vsel %vm440, %v426, 0
          %v451 = vsel %vm440, %v427, 0
          %v454 = vsel %vm440, %v428, 0
          %v457 = vsel %vm440, %v429, 0
          %v460 = vsel %vm440, %v430, 0
          %v463 = vsel %vm440, %v431, 0
          %465 = vmatprep.subr.mxu0 0.0
          %466 = vmatpush1.msra.mxu0 %v416
          %467 = vmatprep.subr.mxu0 0.0
          %468 = vmatpush1.msra.mxu0 %v417
          %469 = vmatprep.subr.mxu0 0.0
          %470 = vmatpush1.msra.mxu0 %v418
          %471 = vmatprep.subr.mxu0 0.0
          %472 = vmatpush1.msra.mxu0 %v419
          %473 = vmatprep.subr.mxu0 0.0
          %474 = vmatpush1.msra.mxu0 %v420
          %475 = vmatprep.subr.mxu0 0.0
          %476 = vmatpush1.msra.mxu0 %v421
          %477 = vmatprep.subr.mxu0 0.0
          %478 = vmatpush1.msra.mxu0 %v422
          %479 = vmatprep.subr.mxu0 0.0
          %480 = vmatpush1.msra.mxu0 %v423
          %481 = vmatprep.subr.mxu0 0.0
          %482 = vmatpush1.msra.mxu0 0.0
          %483 = vmatprep.subr.mxu0 0.0
          %484 = vmatpush1.msra.mxu0 0.0
          %485 = vmatprep.subr.mxu0 0.0
          %486 = vmatpush1.msra.mxu0 0.0
          %487 = vmatprep.subr.mxu0 0.0
          %488 = vmatpush1.msra.mxu0 0.0
          %489 = vmatprep.subr.mxu0 0.0
          %490 = vmatpush1.msra.mxu0 0.0
          %491 = vmatprep.subr.mxu0 0.0
          %492 = vmatpush1.msra.mxu0 0.0
          %493 = vmatprep.subr.mxu0 0.0
          %494 = vmatpush1.msra.mxu0 0.0
          %495 = vmatprep.subr.mxu0 0.0
          %496 = vmatpush1.msra.mxu0 0.0
          %497 = vmatprep.subr.mxu0 0.0
          %498 = vmatpush1.msra.mxu0 0.0
          %499 = vmatprep.subr.mxu0 0.0
          %500 = vmatpush1.msra.mxu0 0.0
          %501 = vmatprep.subr.mxu0 0.0
          %502 = vmatpush1.msra.mxu0 0.0
          %503 = vmatprep.subr.mxu0 0.0
          %504 = vmatpush1.msra.mxu0 0.0
          %505 = vmatprep.subr.mxu0 0.0
          %506 = vmatpush1.msra.mxu0 0.0
          %507 = vmatprep.subr.mxu0 0.0
          %508 = vmatpush1.msra.mxu0 0.0
          %509 = vmatprep.subr.mxu0 0.0
          %510 = vmatpush1.msra.mxu0 0.0
          %511 = vmatprep.subr.mxu0 0.0
          %512 = vmatpush1.msra.mxu0 0.0
          %513 = vmatprep.subr.mxu0 0.0
          %514 = vmatpush1.msra.mxu0 0.0
          %515 = vmatprep.subr.mxu0 0.0
          %516 = vmatpush1.msra.mxu0 0.0
          %517 = vmatprep.subr.mxu0 0.0
          %518 = vmatpush1.msra.mxu0 0.0
          %519 = vmatprep.subr.mxu0 0.0
          %520 = vmatpush1.msra.mxu0 0.0
          %521 = vmatprep.subr.mxu0 0.0
          %522 = vmatpush1.msra.mxu0 0.0
          %523 = vmatprep.subr.mxu0 0.0
          %524 = vmatpush1.msra.mxu0 0.0
          %525 = vmatprep.subr.mxu0 0.0
          %526 = vmatpush1.msra.mxu0 0.0
          %527 = vmatprep.subr.mxu0 0.0
          %528 = vmatpush1.msra.mxu0 0.0
          %529 = vmatprep.mubr.f32.mxu0 0.0
          %530 = vmatmul.mubr.f32.gmra.mrb[0].mxu0 %v442
          %v531 = vpop.f32.mrb[0].mxu0
          %v532 = vadd.f32 %v432, %v531
          %v533 = vpop.f32.mrb[0].mxu0
          %534 = vmatprep.mubr.f32.mxu0 0.0
          %535 = vmatmul.mubr.f32.gmra.mrb[0].mxu0 %v445
          %v536 = vpop.f32.mrb[0].mxu0
          %v537 = vadd.f32 %v433, %v536
          %v538 = vpop.f32.mrb[0].mxu0
          %539 = vmatprep.mubr.f32.mxu0 0.0
          %540 = vmatmul.mubr.f32.gmra.mrb[0].mxu0 %v448
          %v541 = vpop.f32.mrb[0].mxu0
          %v542 = vadd.f32 %v434, %v541
          %v543 = vpop.f32.mrb[0].mxu0
          %544 = vmatprep.mubr.f32.mxu0 0.0
          %545 = vmatmul.mubr.f32.gmra.mrb[0].mxu0 %v451
          %v546 = vpop.f32.mrb[0].mxu0
          %v547 = vadd.f32 %v435, %v546
          %v548 = vpop.f32.mrb[0].mxu0
          %549 = vmatprep.mubr.f32.mxu0 0.0
          %550 = vmatmul.mubr.f32.gmra.mrb[0].mxu0 %v454
          %v551 = vpop.f32.mrb[0].mxu0
          %v552 = vadd.f32 %v436, %v551
          %v553 = vpop.f32.mrb[0].mxu0
          %554 = vmatprep.mubr.f32.mxu0 0.0
          %555 = vmatmul.mubr.f32.gmra.mrb[0].mxu0 %v457
          %v556 = vpop.f32.mrb[0].mxu0
          %v557 = vadd.f32 %v437, %v556
          %v558 = vpop.f32.mrb[0].mxu0
          %559 = vmatprep.mubr.f32.mxu0 0.0
          %560 = vmatmul.mubr.f32.gmra.mrb[0].mxu0 %v460
          %v561 = vpop.f32.mrb[0].mxu0
          %v562 = vadd.f32 %v438, %v561
          %v563 = vpop.f32.mrb[0].mxu0
          %564 = vmatprep.mubr.f32.mxu0 0.0
          %565 = vmatmul.mubr.f32.gmra.mrb[0].mxu0 %v463
          %v566 = vpop.f32.mrb[0].mxu0
          %v567 = vadd.f32 %v439, %v566
          %v568 = vpop.f32.mrb[0].mxu0
          %569 = vdwg.mxu0
          %v570 = vmax.f32 %v532, 0.0
          %v571 = vmax.f32 %v537, 0.0
          %v572 = vmax.f32 %v542, 0.0
          %v573 = vmax.f32 %v547, 0.0
          %v574 = vmax.f32 %v552, 0.0
          %v575 = vmax.f32 %v557, 0.0
          %v576 = vmax.f32 %v562, 0.0
          %v577 = vmax.f32 %v567, 0.0
          %v578 = vld [vmem:[%s2 + $0x40] sm:$0xff]
          %v579 = vld [vmem:[%s2 + $0x48] sm:$0xff]
          %v580 = vld [vmem:[%s2 + $0x50] sm:$0xff]
          %v581 = vld [vmem:[%s2 + $0x58] sm:$0xff]
          %v582 = vld [vmem:[%s2 + $0x60] sm:$0xff]
          %v583 = vld [vmem:[%s2 + $0x68] sm:$0xff]
          %v584 = vld [vmem:[%s2 + $0x70] sm:$0xff]
          %v585 = vld [vmem:[%s2 + $0x78] sm:$0xff]
          %v586 = vld [vmem:[%s3 + $0x80] sm:$0xff]
          %v587 = vld [vmem:[%s3 + $0x88] sm:$0xff]
          %v588 = vld [vmem:[%s3 + $0x90] sm:$0xff]
          %v589 = vld [vmem:[%s3 + $0x98] sm:$0xff]
          %v590 = vld [vmem:[%s3 + $0xa0] sm:$0xff]
          %v591 = vld [vmem:[%s3 + $0xa8] sm:$0xff]
          %v592 = vld [vmem:[%s3 + $0xb0] sm:$0xff]
          %v593 = vld [vmem:[%s3 + $0xb8] sm:$0xff]
          %v595 = vsel %vm440, %v578, 0
          %v598 = vsel %vm440, %v579, 0
          %v601 = vsel %vm440, %v580, 0
          %v604 = vsel %vm440, %v581, 0
          %v607 = vsel %vm440, %v582, 0
          %v610 = vsel %vm440, %v583, 0
          %v613 = vsel %vm440, %v584, 0
          %v616 = vsel %vm440, %v585, 0
          %618 = vmatprep.subr.mxu0 0.0
          %619 = vmatpush1.msra.mxu0 %v570
          %620 = vmatprep.subr.mxu0 0.0
          %621 = vmatpush1.msra.mxu0 %v571
          %622 = vmatprep.subr.mxu0 0.0
          %623 = vmatpush1.msra.mxu0 %v572
          %624 = vmatprep.subr.mxu0 0.0
          %625 = vmatpush1.msra.mxu0 %v573
          %626 = vmatprep.subr.mxu0 0.0
          %627 = vmatpush1.msra.mxu0 %v574
          %628 = vmatprep.subr.mxu0 0.0
          %629 = vmatpush1.msra.mxu0 %v575
          %630 = vmatprep.subr.mxu0 0.0
          %631 = vmatpush1.msra.mxu0 %v576
          %632 = vmatprep.subr.mxu0 0.0
          %633 = vmatpush1.msra.mxu0 %v577
          %634 = vmatprep.subr.mxu0 0.0
          %635 = vmatpush1.msra.mxu0 0.0
          %636 = vmatprep.subr.mxu0 0.0
          %637 = vmatpush1.msra.mxu0 0.0
          %638 = vmatprep.subr.mxu0 0.0
          %639 = vmatpush1.msra.mxu0 0.0
          %640 = vmatprep.subr.mxu0 0.0
          %641 = vmatpush1.msra.mxu0 0.0
          %642 = vmatprep.subr.mxu0 0.0
          %643 = vmatpush1.msra.mxu0 0.0
          %644 = vmatprep.subr.mxu0 0.0
          %645 = vmatpush1.msra.mxu0 0.0
          %646 = vmatprep.subr.mxu0 0.0
          %647 = vmatpush1.msra.mxu0 0.0
          %648 = vmatprep.subr.mxu0 0.0
          %649 = vmatpush1.msra.mxu0 0.0
          %650 = vmatprep.subr.mxu0 0.0
          %651 = vmatpush1.msra.mxu0 0.0
          %652 = vmatprep.subr.mxu0 0.0
          %653 = vmatpush1.msra.mxu0 0.0
          %654 = vmatprep.subr.mxu0 0.0
          %655 = vmatpush1.msra.mxu0 0.0
          %656 = vmatprep.subr.mxu0 0.0
          %657 = vmatpush1.msra.mxu0 0.0
          %658 = vmatprep.subr.mxu0 0.0
          %659 = vmatpush1.msra.mxu0 0.0
          %660 = vmatprep.subr.mxu0 0.0
          %661 = vmatpush1.msra.mxu0 0.0
          %662 = vmatprep.subr.mxu0 0.0
          %663 = vmatpush1.msra.mxu0 0.0
          %664 = vmatprep.subr.mxu0 0.0
          %665 = vmatpush1.msra.mxu0 0.0
          %666 = vmatprep.subr.mxu0 0.0
          %667 = vmatpush1.msra.mxu0 0.0
          %668 = vmatprep.subr.mxu0 0.0
          %669 = vmatpush1.msra.mxu0 0.0
          %670 = vmatprep.subr.mxu0 0.0
          %671 = vmatpush1.msra.mxu0 0.0
          %672 = vmatprep.subr.mxu0 0.0
          %673 = vmatpush1.msra.mxu0 0.0
          %674 = vmatprep.subr.mxu0 0.0
          %675 = vmatpush1.msra.mxu0 0.0
          %676 = vmatprep.subr.mxu0 0.0
          %677 = vmatpush1.msra.mxu0 0.0
          %678 = vmatprep.subr.mxu0 0.0
          %679 = vmatpush1.msra.mxu0 0.0
          %680 = vmatprep.subr.mxu0 0.0
          %681 = vmatpush1.msra.mxu0 0.0
          %682 = vmatprep.mubr.f32.mxu0 0.0
          %683 = vmatmul.mubr.f32.gmra.mrb[0].mxu0 %v595
          %v684 = vpop.f32.mrb[0].mxu0
          %v685 = vadd.f32 %v586, %v684
          %v686 = vpop.f32.mrb[0].mxu0
          %687 = vmatprep.mubr.f32.mxu0 0.0
          %688 = vmatmul.mubr.f32.gmra.mrb[0].mxu0 %v598
          %v689 = vpop.f32.mrb[0].mxu0
          %v690 = vadd.f32 %v587, %v689
          %v691 = vpop.f32.mrb[0].mxu0
          %692 = vmatprep.mubr.f32.mxu0 0.0
          %693 = vmatmul.mubr.f32.gmra.mrb[0].mxu0 %v601
          %v694 = vpop.f32.mrb[0].mxu0
          %v695 = vadd.f32 %v588, %v694
          %v696 = vpop.f32.mrb[0].mxu0
          %697 = vmatprep.mubr.f32.mxu0 0.0
          %698 = vmatmul.mubr.f32.gmra.mrb[0].mxu0 %v604
          %v699 = vpop.f32.mrb[0].mxu0
          %v700 = vadd.f32 %v589, %v699
          %v701 = vpop.f32.mrb[0].mxu0
          %702 = vmatprep.mubr.f32.mxu0 0.0
          %703 = vmatmul.mubr.f32.gmra.mrb[0].mxu0 %v607
          %v704 = vpop.f32.mrb[0].mxu0
          %v705 = vadd.f32 %v590, %v704
          %v706 = vpop.f32.mrb[0].mxu0
          %707 = vmatprep.mubr.f32.mxu0 0.0
          %708 = vmatmul.mubr.f32.gmra.mrb[0].mxu0 %v610
          %v709 = vpop.f32.mrb[0].mxu0
          %v710 = vadd.f32 %v591, %v709
          %v711 = vpop.f32.mrb[0].mxu0
          %712 = vmatprep.mubr.f32.mxu0 0.0
          %713 = vmatmul.mubr.f32.gmra.mrb[0].mxu0 %v613
          %v714 = vpop.f32.mrb[0].mxu0
          %v715 = vadd.f32 %v592, %v714
          %v716 = vpop.f32.mrb[0].mxu0
          %717 = vmatprep.mubr.f32.mxu0 0.0
          %718 = vmatmul.mubr.f32.gmra.mrb[0].mxu0 %v616
          %v719 = vpop.f32.mrb[0].mxu0
          %v720 = vadd.f32 %v593, %v719
          %v721 = vpop.f32.mrb[0].mxu0
          %722 = vdwg.mxu0
          %v723 = vmax.f32 %v685, 0.0
          %v724 = vmax.f32 %v690, 0.0
          %v725 = vmax.f32 %v695, 0.0
          %v726 = vmax.f32 %v700, 0.0
          %v727 = vmax.f32 %v705, 0.0
          %v728 = vmax.f32 %v710, 0.0
          %v729 = vmax.f32 %v715, 0.0
          %v730 = vmax.f32 %v720, 0.0
          %v731 = vld [vmem:[%s2 + $0x80] sm:$0xff]
          %v732 = vld [vmem:[%s3 + $0xc0] sm:$0xff]
          %v734 = vsel %vm440, %v731, 0
          %736 = vmatprep.subr.mxu0 0.0
          %737 = vmatpush1.msra.mxu0 %v723
          %738 = vmatprep.subr.mxu0 0.0
          %739 = vmatpush1.msra.mxu0 %v724
          %740 = vmatprep.subr.mxu0 0.0
          %741 = vmatpush1.msra.mxu0 %v725
          %742 = vmatprep.subr.mxu0 0.0
          %743 = vmatpush1.msra.mxu0 %v726
          %744 = vmatprep.subr.mxu0 0.0
          %745 = vmatpush1.msra.mxu0 %v727
          %746 = vmatprep.subr.mxu0 0.0
          %747 = vmatpush1.msra.mxu0 %v728
          %748 = vmatprep.subr.mxu0 0.0
          %749 = vmatpush1.msra.mxu0 %v729
          %750 = vmatprep.subr.mxu0 0.0
          %751 = vmatpush1.msra.mxu0 %v730
          %752 = vmatprep.subr.mxu0 0.0
          %753 = vmatpush1.msra.mxu0 0.0
          %754 = vmatprep.subr.mxu0 0.0
          %755 = vmatpush1.msra.mxu0 0.0
          %756 = vmatprep.subr.mxu0 0.0
          %757 = vmatpush1.msra.mxu0 0.0
          %758 = vmatprep.subr.mxu0 0.0
          %759 = vmatpush1.msra.mxu0 0.0
          %760 = vmatprep.subr.mxu0 0.0
          %761 = vmatpush1.msra.mxu0 0.0
          %762 = vmatprep.subr.mxu0 0.0
          %763 = vmatpush1.msra.mxu0 0.0
          %764 = vmatprep.subr.mxu0 0.0
          %765 = vmatpush1.msra.mxu0 0.0
          %766 = vmatprep.subr.mxu0 0.0
          %767 = vmatpush1.msra.mxu0 0.0
          %768 = vmatprep.subr.mxu0 0.0
          %769 = vmatpush1.msra.mxu0 0.0
          %770 = vmatprep.subr.mxu0 0.0
          %771 = vmatpush1.msra.mxu0 0.0
          %772 = vmatprep.subr.mxu0 0.0
          %773 = vmatpush1.msra.mxu0 0.0
          %774 = vmatprep.subr.mxu0 0.0
          %775 = vmatpush1.msra.mxu0 0.0
          %776 = vmatprep.subr.mxu0 0.0
          %777 = vmatpush1.msra.mxu0 0.0
          %778 = vmatprep.subr.mxu0 0.0
          %779 = vmatpush1.msra.mxu0 0.0
          %780 = vmatprep.subr.mxu0 0.0
          %781 = vmatpush1.msra.mxu0 0.0
          %782 = vmatprep.subr.mxu0 0.0
          %783 = vmatpush1.msra.mxu0 0.0
          %784 = vmatprep.subr.mxu0 0.0
          %785 = vmatpush1.msra.mxu0 0.0
          %786 = vmatprep.subr.mxu0 0.0
          %787 = vmatpush1.msra.mxu0 0.0
          %788 = vmatprep.subr.mxu0 0.0
          %789 = vmatpush1.msra.mxu0 0.0
          %790 = vmatprep.subr.mxu0 0.0
          %791 = vmatpush1.msra.mxu0 0.0
          %792 = vmatprep.subr.mxu0 0.0
          %793 = vmatpush1.msra.mxu0 0.0
          %794 = vmatprep.subr.mxu0 0.0
          %795 = vmatpush1.msra.mxu0 0.0
          %796 = vmatprep.subr.mxu0 0.0
          %797 = vmatpush1.msra.mxu0 0.0
          %798 = vmatprep.subr.mxu0 0.0
          %799 = vmatpush1.msra.mxu0 0.0
          %800 = vmatprep.mubr.f32.mxu0 0.0
          %801 = vmatmul.mubr.f32.gmra.mrb[0].mxu0 %v734
          %v802 = vpop.f32.mrb[0].mxu0
          %v803 = vadd.f32 %v732, %v802
          %v804 = vpop.f32.mrb[0].mxu0
          %805 = vdwg.mxu0
          %s806 = sshra.s32 %s263, 7
          %s807 = sand.u32 %s263, 127
          %s808 = smul.addr %s806, 8
          %s809 = scalar_lea.vmem [#allocation2], %s808
          %810 = vst [vmem:[%s809] sm:$0xff] %v803
          %v811 = vlaneseq
          %v812 = vand.u32 %v811, 127
          %v813 = vstv %s263
          %v814 = vadd.s32 %v813, %v812
          %vm815 = vcmp.lt.s32.totalorder %v814, 200
          %v816 = vsel %vm815, %v803, 0.0
          %p817 = scmp.eq.s32.totalorder %s20, 0
          // Predicated region
          $region79: #{dueling_dqn_forward.1} parent=77 // pred_check
            %p818 = pneg %p817
          $region80: #{dueling_dqn_forward.1} parent=77 // pred_check_branch
            %820 = sbr.rel (%p818) target = $region82
          $region81: #{dueling_dqn_forward.1} parent=77 // pred_region
            %vm821 = vcmask 0
            %822 = vst.msk [vmem:[#allocation3] sm:$0x1] %vm821, 0.0
          $region82: #{dueling_dqn_forward.1} parent=77 // pred_fallthru
            _
          %v823 = vld [vmem:[#allocation3] sm:$0x1]
          %vm824 = vcmask 1043456
          %v825 = vsel %vm824, %v816, 0.0
          %826 = vadd.xlane.f32.xlu0 %v825
          %v827 = vpop.xlane.xlu0 %826
          %v828 = vrot.slane %v827, 4
          %v829 = vadd.f32 %v827, %v828
          %v830 = vrot.slane %v829, 2
          %v831 = vadd.f32 %v829, %v830
          %v832 = vrot.slane %v831, 1
          %v833 = vadd.f32 %v831, %v832
          %s834 = vtos %v833
          %v835 = vstv %s834
          %v836 = vadd.f32 %v823, %v835
          %vm837 = vcmask 0
          %838 = vst.msk [vmem:[#allocation3] sm:$0x1] %vm837, %v836
        $region78: #{dueling_dqn_forward.1} parent=69 // pred_fallthru
          _
        %p839 = scmp.eq.s32.totalorder %s19, 1
        // Predicated region
        $region83: #{dueling_dqn_forward.1} parent=69 // pred_check
          %p840 = pneg %p839
        $region84: #{dueling_dqn_forward.1} parent=69 // pred_check_branch
          %842 = sbr.rel (%p840) target = $region86
        $region85: #{dueling_dqn_forward.1} parent=69 // pred_region
          %s843 = sshra.s32 %s263, 7
          %s844 = sand.u32 %s263, 127
          %s845 = smul.addr %s843, 8
          %s846 = scalar_lea.vmem [#allocation2], %s845
          %v847 = vld [vmem:[%s846] sm:$0xff]
          %v848 = vld [vmem:[#allocation3] sm:$0x1]
          %v849 = vmul.f32 %v848, 0.00125
          %v851 = vlaneseq
          %v852 = vshrl.u32 %v851, 7
          %v853 = vsub.s32 0, %v852
          %v854 = vrot.slane %v849, %v853
          %855 = vset.pattern.permute.xlu0 0
          %856 = vperm.xlu0 %855, %v854
          %v857 = vpop.permute.xlu0 %856
          %v859 = vsub.f32 %v847, %v857
          %v860 = vlaneseq
          %v861 = vshrl.u32 %v860, 7
          %v862 = vsub.s32 4, %v861
          %v863 = vrot.slane %v847, %v862
          %v864 = vadd.f32 %v863, %v859
          %865 = vst [vmem:[%s261] sm:$0xff] %v864
        $region86: #{dueling_dqn_forward.1} parent=69 // pred_fallthru
          _
        %s866 = smul.u32 %s20, %s19
        %p867 = scmp.lt.s32.totalorder %s866, 1
        %s868 = scalar_select %p867, %s866, 1
        %s869 = smul.addr %s868, 8
        %s870 = scalar_lea.vmem %s4, %s869
        // Predicated region
        $region87: #{dueling_dqn_forward.1} parent=69 // pred_check
          %p871 = pneg %p142
        $region88: #{dueling_dqn_forward.1} parent=69 // pred_check_branch
          %873 = sbr.rel (%p871) target = $region90
        $region89: #{dueling_dqn_forward.1} parent=69 // pred_region
          %s874 = smul.u32 %s20, %s19
        $region90: #{dueling_dqn_forward.1} parent=69 // pred_fallthru
          _
      $region70: #{dueling_dqn_forward.1} parent=5 // pred_fallthru
        _
      %p875 = scmp.le.s32.totalorder 2, %s10
      // Predicated region
      $region91: #{dueling_dqn_forward.1} parent=5 // pred_check
        %p876 = pneg %p875
      $region92: #{dueling_dqn_forward.1} parent=5 // pred_check_branch
        %878 = sbr.rel (%p876) target = $region94
      $region93: #{dueling_dqn_forward.1} parent=5 // pred_region
        %s879 = ssub.s32 %s10, 2
        // Predicated region
        $region95: #{dueling_dqn_forward.1} parent=93 // pred_check
          %p880 = pneg %p148
        $region96: #{dueling_dqn_forward.1} parent=93 // pred_check_branch
          %882 = sbr.rel (%p880) target = $region98
        $region97: #{dueling_dqn_forward.1} parent=93 // pred_region
          %s883 = smul.u32 %s22, %s21
          %p884 = scmp.lt.s32.totalorder %s883, 1
          %s885 = scalar_select %p884, %s883, 1
          %s886 = smul.addr %s885, 8
          %s887 = scalar_lea.vmem %s4, %s886
        $region98: #{dueling_dqn_forward.1} parent=93 // pred_fallthru
          _
      $region94: #{dueling_dqn_forward.1} parent=5 // pred_fallthru
        _
    $region6: #{dueling_dqn_forward.1} parent=1 // loop_footer
      %s14 = sadd.s32 1, %s10
    $region7: #{dueling_dqn_forward.1} parent=1 // loop_footer_branch
      %9 = sbr.rel target = $region3
    $region8: #{dueling_dqn_forward.1} parent=1 // loop_exit
      _

</llo_original>
